<compile_context>
chip_gen: v7x
topology: tpu7x:2x2x1
jax: 0.10.0
libtpu: 0.0.40
codegen_flags: <defaults>
</compile_context>

<pallas_src>
import functools

import jax
import jax.numpy as jnp
from jax.experimental import pallas as pl
from jax.experimental.pallas import tpu as pltpu


def _round_up(x, k):
    return ((x + k - 1) // k) * k


def _mmd_tile_kernel(ze_i_ref, ze_j_ref, zc_i_ref, zc_j_ref,
                     ne_i_ref, ne_j_ref, nc_i_ref, nc_j_ref,
                     sy_i_ref, syt_j_ref, ge_ref, gc_ref,
                     out_ref, *, n_sig_e, n_sig_c, d_y):
    i = pl.program_id(0)
    j = pl.program_id(1)

    @pl.when(j == 0)
    def _init():
        out_ref[...] = jnp.zeros_like(out_ref)

    # Signed joint kernel is symmetric: only compute upper-triangular blocks.
    @pl.when(j >= i)
    def _compute():
        def rbf_mix(zi_ref, zj_ref, ni_ref, nj_ref, g_ref, n_sig):
            # Gram tile via MXU (contract feature axis, no explicit transpose).
            zzt = jax.lax.dot_general(
                zi_ref[...], zj_ref[...],
                (((1,), (1,)), ((), ())),
                preferred_element_type=jnp.float32)             # (TM, TN)
            # squared pairwise distances from precomputed row norms
            expo = ni_ref[...] - 2.0 * zzt + nj_ref[...]        # (TM,1)+(TM,TN)+(1,TN)
            k = jnp.exp(expo * g_ref[0])                         # gamma from SMEM
            for s in range(1, n_sig):                            # static unroll
                k = k + jnp.exp(expo * g_ref[s])
            return k

        k = rbf_mix(ze_i_ref, ze_j_ref, ne_i_ref, ne_j_ref, ge_ref, n_sig_e)
        k = k * rbf_mix(zc_i_ref, zc_j_ref, nc_i_ref, nc_j_ref, gc_ref, n_sig_c)

        # Linear label kernel with the MMD signs already folded in: pure VPU
        # outer product(s), no MXU, no 128x label padding.
        k_y = sy_i_ref[:, 0:1] * syt_j_ref[0:1, :]
        for c in range(1, d_y):
            k_y = k_y + sy_i_ref[:, c:c + 1] * syt_j_ref[c:c + 1, :]
        k = k * k_y

        # Strictly-upper blocks represent both (i,j) and (j,i): count twice.
        w = 1.0 + (j > i).astype(jnp.float32)
        out_ref[...] += w * jnp.sum(k)


def mix_rbf_mmd2_joint_regress_2_feature_1_label(
        X_e_hat, X_e_true, X_c_hat, X_c_true, Y_hat, Y_true,
        sigma_list_effect, sigma_list_cause):
    assert X_e_hat.shape[0] == X_e_true.shape[0]
    m = X_e_hat.shape[0]
    n = 2 * m
    f32 = jnp.float32

    sigma_list_effect = jnp.asarray(sigma_list_effect, f32)
    sigma_list_cause = jnp.asarray(sigma_list_cause, f32)

    Ze = jnp.concatenate([X_e_hat, X_e_true], axis=0).astype(f32)
    Zc = jnp.concatenate([X_c_hat, X_c_true], axis=0).astype(f32)
    Zy = jnp.concatenate([Y_hat, Y_true], axis=0).astype(f32)
    if Zy.ndim == 1:
        Zy = Zy[:, None]
    d_y = Zy.shape[1]

    # Fold +/-1 sign vector into labels: s_i s_j (y_i . y_j) = (s_i y_i).(s_j y_j)
    s = jnp.concatenate([jnp.ones((m,), f32), -jnp.ones((m,), f32)])
    Sy = Zy * s[:, None]

    # ---- tiling geometry --------------------------------------------------
    n128 = _round_up(n, 128)
    tile = min(256, n128)                     # fits v5e/v6e/v7x VMEM budgets
    n_pad = _round_up(n, tile)
    nb = n_pad // tile

    def pad_rows(a):
        return jnp.pad(a, ((0, n_pad - a.shape[0]), (0, 0)))

    def pad_feat(a):
        d = a.shape[1]
        dp = _round_up(max(d, 1), 128)
        return jnp.pad(a, ((0, 0), (0, dp - d)))

    Ze_p = pad_rows(pad_feat(Ze))             # (n_pad, de_pad)
    Zc_p = pad_rows(pad_feat(Zc))             # (n_pad, dc_pad)
    Sy_p = pad_rows(Sy)                       # (n_pad, d_y) zero rows => masked
    SyT_p = Sy_p.T                            # (d_y, n_pad)

    ne_col = jnp.sum(Ze_p * Ze_p, axis=1, keepdims=True)   # (n_pad, 1)
    nc_col = jnp.sum(Zc_p * Zc_p, axis=1, keepdims=True)
    ne_row = ne_col.reshape(1, n_pad)                       # (1, n_pad)
    nc_row = nc_col.reshape(1, n_pad)

    gam_e = (-1.0 / (2.0 * sigma_list_effect ** 2))
    gam_c = (-1.0 / (2.0 * sigma_list_cause ** 2))

    de_pad = Ze_p.shape[1]
    dc_pad = Zc_p.shape[1]

    kernel = functools.partial(
        _mmd_tile_kernel,
        n_sig_e=int(sigma_list_effect.shape[0]),
        n_sig_c=int(sigma_list_cause.shape[0]),
        d_y=d_y)

    # Column-side blocks: use max(i, j) so the skipped (j < i) steps keep
    # revisiting an already-resident block (no extra DMA traffic).
    col = lambda i, j: jnp.maximum(i, j)

    partials = pl.pallas_call(
        kernel,
        out_shape=jax.ShapeDtypeStruct((nb, 1, 128), f32),
        grid=(nb, nb),
        in_specs=[
            pl.BlockSpec((tile, de_pad), lambda i, j: (i, 0)),        # Ze row block
            pl.BlockSpec((tile, de_pad), lambda i, j: (col(i, j), 0)),  # Ze col block
            pl.BlockSpec((tile, dc_pad), lambda i, j: (i, 0)),        # Zc row block
            pl.BlockSpec((tile, dc_pad), lambda i, j: (col(i, j), 0)),  # Zc col block
            pl.BlockSpec((tile, 1), lambda i, j: (i, 0)),             # ||ze_i||^2
            pl.BlockSpec((1, tile), lambda i, j: (0, col(i, j))),     # ||ze_j||^2
            pl.BlockSpec((tile, 1), lambda i, j: (i, 0)),             # ||zc_i||^2
            pl.BlockSpec((1, tile), lambda i, j: (0, col(i, j))),     # ||zc_j||^2
            pl.BlockSpec((tile, d_y), lambda i, j: (i, 0)),           # signed labels (rows)
            pl.BlockSpec((d_y, tile), lambda i, j: (0, col(i, j))),   # signed labels (cols)
            pl.BlockSpec(memory_space=pltpu.MemorySpace.SMEM),        # gammas effect
            pl.BlockSpec(memory_space=pltpu.MemorySpace.SMEM),        # gammas cause
        ],
        out_specs=pl.BlockSpec((1, 1, 128), lambda i, j: (i, 0, 0)),
        compiler_params=pltpu.CompilerParams(
            dimension_semantics=("parallel", "arbitrary"),
            vmem_limit_bytes=32 * 1024 * 1024),
    )(Ze_p, Ze_p, Zc_p, Zc_p, ne_col, ne_row, nc_col, nc_row,
      Sy_p, SyT_p, gam_e, gam_c)

    total = jnp.sum(partials[:, 0, 0])
    return total / jnp.float32(m * m)


# ------------------------- pure-JAX reference (for checking) ------------------
def _reference(X_e_hat, X_e_true, X_c_hat, X_c_true, Y_hat, Y_true,
               sigma_e, sigma_c):
    def mix_rbf(X, Y, sigmas):
        m = X.shape[0]
        Z = jnp.concatenate([X, Y], 0)
        ZZT = Z @ Z.T
        d = jnp.diag(ZZT)[:, None]
        expo = d - 2.0 * ZZT + d.T
        K = jnp.sum(
            jnp.exp(expo[None, :, :] * (-(1.0 / (2.0 * sigmas ** 2)))[:, None, None]),
            axis=0)
        return K[:m, :m], K[:m, m:], K[m:, m:]

    def linear(X, Y):
        m = X.shape[0]
        Z = jnp.concatenate([X, Y], 0)
        K = Z @ Z.T
        return K[:m, :m], K[:m, m:], K[m:, m:]

    K_XX, K_XY, K_YY = mix_rbf(X_e_hat, X_e_true, sigma_e)
    K_XX1, K_XY1, K_YY1 = mix_rbf(X_c_hat, X_c_true, sigma_c)
    K_XX2, K_XY2, K_YY2 = linear(Y_hat, Y_true)
    K_XX = K_XX * K_XX1 * K_XX2
    K_YY = K_YY * K_YY1 * K_YY2
    K_XY = K_XY * K_XY1 * K_XY2
    m = K_XX.shape[0]
    return (jnp.sum(K_XX) + jnp.sum(K_YY) - 2.0 * jnp.sum(K_XY)) / (m * m)


if __name__ == "__main__":
    key = jax.random.PRNGKey(0)
    k1, k2, k3, k4, k5, k6 = jax.random.split(key, 6)

    m, d_e, d_c, d_y = 8, 16, 16, 1     # 2 feature groups + 1 regression label
    X_e_hat = 0.5 * jax.random.normal(k1, (m, d_e), jnp.float32)
    X_e_true = 0.5 * jax.random.normal(k2, (m, d_e), jnp.float32)
    X_c_hat = 0.5 * jax.random.normal(k3, (m, d_c), jnp.float32)
    X_c_true = 0.5 * jax.random.normal(k4, (m, d_c), jnp.float32)
    Y_hat = jax.random.normal(k5, (m, d_y), jnp.float32)
    Y_true = jax.random.normal(k6, (m, d_y), jnp.float32)
    sigma_list_effect = jnp.array([1.0, 2.0, 4.0], jnp.float32)
    sigma_list_cause = jnp.array([0.5, 1.0], jnp.float32)

    mmd2 = mix_rbf_mmd2_joint_regress_2_feature_1_label(
        X_e_hat, X_e_true, X_c_hat, X_c_true, Y_hat, Y_true,
        sigma_list_effect, sigma_list_cause)
    mmd2 = jax.block_until_ready(mmd2)

    ref = _reference(X_e_hat, X_e_true, X_c_hat, X_c_true, Y_hat, Y_true,
                     sigma_list_effect, sigma_list_cause)
    assert jnp.allclose(mmd2, ref, rtol=5e-4, atol=2e-5), (mmd2, ref)
    print("KERNEL_OK")
</pallas_src>

<mosaic_0001>
module attributes {stable_mosaic.version = 11 : i64} {
  func.func @_mmd_tile_kernel(%arg0: i32, %arg1: i32, %arg2: memref<128x128xf32, #tpu.memory_space<vmem>>, %arg3: memref<128x128xf32, #tpu.memory_space<vmem>>, %arg4: memref<128x128xf32, #tpu.memory_space<vmem>>, %arg5: memref<128x128xf32, #tpu.memory_space<vmem>>, %arg6: memref<128x1xf32, #tpu.memory_space<vmem>>, %arg7: memref<1x128xf32, #tpu.memory_space<vmem>>, %arg8: memref<128x1xf32, #tpu.memory_space<vmem>>, %arg9: memref<1x128xf32, #tpu.memory_space<vmem>>, %arg10: memref<128x1xf32, #tpu.memory_space<vmem>>, %arg11: memref<1x128xf32, #tpu.memory_space<vmem>>, %arg12: memref<3xf32, #tpu.memory_space<smem>>, %arg13: memref<2xf32, #tpu.memory_space<smem>>, %arg14: memref<1x1x128xf32, #tpu.memory_space<vmem>>) attributes {dimension_semantics = [#tpu.dimension_semantics<parallel>, #tpu.dimension_semantics<arbitrary>], iteration_bounds = array<i64: 1, 1>, scalar_prefetch = 0 : i64, scratch_operands = 0 : i64, tpu.core_type = #tpu.core_type<tc>, window_params = [{transform_indices = @transform_0, window_bounds = array<i64: 128, 128>}, {transform_indices = @transform_1, window_bounds = array<i64: 128, 128>}, {transform_indices = @transform_2, window_bounds = array<i64: 128, 128>}, {transform_indices = @transform_3, window_bounds = array<i64: 128, 128>}, {transform_indices = @transform_4, window_bounds = array<i64: 128, 1>}, {transform_indices = @transform_5, window_bounds = array<i64: 1, 128>}, {transform_indices = @transform_6, window_bounds = array<i64: 128, 1>}, {transform_indices = @transform_7, window_bounds = array<i64: 1, 128>}, {transform_indices = @transform_8, window_bounds = array<i64: 128, 1>}, {transform_indices = @transform_9, window_bounds = array<i64: 1, 128>}, {transform_indices = @transform_10, window_bounds = array<i64: 3>}, {transform_indices = @transform_11, window_bounds = array<i64: 2>}, {transform_indices = @transform_12, window_bounds = array<i64: 1, 1, 128>}]} {
    %c0_i32 = arith.constant 0 : i32
    %0 = arith.cmpi eq, %arg1, %c0_i32 : i32
    %1 = arith.extui %0 : i1 to i32
    %c0_i32_0 = arith.constant 0 : i32
    %2 = arith.cmpi ne, %1, %c0_i32_0 : i32
    scf.if %2 {
      %cst = arith.constant 0.000000e+00 : f32
      %6 = vector.broadcast %cst : f32 to vector<1x1x128xf32>
      %c0 = arith.constant 0 : index
      %c0_2 = arith.constant 0 : index
      %c0_3 = arith.constant 0 : index
      %7 = vector.load %arg14[%c0, %c0_2, %c0_3] : memref<1x1x128xf32, #tpu.memory_space<vmem>>, vector<1x1x128xf32>
      tpu.vector_store %arg14[%c0, %c0_2, %c0_3], %6 {strides = array<i32>} : memref<1x1x128xf32, #tpu.memory_space<vmem>>, vector<1x1x128xf32>,
    } else {
    }
    %3 = arith.cmpi sge, %arg1, %arg0 : i32
    %4 = arith.extui %3 : i1 to i32
    %c0_i32_1 = arith.constant 0 : i32
    %5 = arith.cmpi ne, %4, %c0_i32_1 : i32
    scf.if %5 {
      %c0 = arith.constant 0 : index
      %c0_2 = arith.constant 0 : index
      %6 = vector.load %arg2[%c0, %c0_2] : memref<128x128xf32, #tpu.memory_space<vmem>>, vector<128x128xf32>
      %c0_3 = arith.constant 0 : index
      %c0_4 = arith.constant 0 : index
      %7 = vector.load %arg3[%c0_3, %c0_4] : memref<128x128xf32, #tpu.memory_space<vmem>>, vector<128x128xf32>
      %cst = arith.constant dense<0.000000e+00> : vector<128x128xf32>
      %8 = tpu.matmul %6, %7, %cst {dimension_numbers = #tpu.dot_dimension_numbers<[1], [1], [0], [0], [0, 0, 1, 0], [], []>} : vector<128x128xf32>, vector<128x128xf32>, vector<128x128xf32> -> vector<128x128xf32>
      %c0_5 = arith.constant 0 : index
      %c0_6 = arith.constant 0 : index
      %9 = vector.load %arg6[%c0_5, %c0_6] : memref<128x1xf32, #tpu.memory_space<vmem>>, vector<128x1xf32>
      %cst_7 = arith.constant 2.000000e+00 : f32
      %10 = vector.broadcast %cst_7 : f32 to vector<128x128xf32>
      %11 = arith.mulf %10, %8 : vector<128x128xf32>
      %12 = vector.broadcast %9 : vector<128x1xf32> to vector<128x128xf32>
      %13 = arith.subf %12, %11 : vector<128x128xf32>
      %c0_8 = arith.constant 0 : index
      %c0_9 = arith.constant 0 : index
      %14 = vector.load %arg7[%c0_8, %c0_9] : memref<1x128xf32, #tpu.memory_space<vmem>>, vector<1x128xf32>
      %15 = vector.broadcast %14 : vector<1x128xf32> to vector<128x128xf32>
      %16 = arith.addf %13, %15 : vector<128x128xf32>
      %c0_10 = arith.constant 0 : index
      %17 = memref.load %arg12[%c0_10] : memref<3xf32, #tpu.memory_space<smem>>
      %18 = vector.broadcast %17 : f32 to vector<128x128xf32>
      %19 = arith.mulf %16, %18 : vector<128x128xf32>
      %20 = math.exp %19 : vector<128x128xf32>
      %c1 = arith.constant 1 : index
      %21 = memref.load %arg12[%c1] : memref<3xf32, #tpu.memory_space<smem>>
      %22 = vector.broadcast %21 : f32 to vector<128x128xf32>
      %23 = arith.mulf %16, %22 : vector<128x128xf32>
      %24 = math.exp %23 : vector<128x128xf32>
      %25 = arith.addf %20, %24 : vector<128x128xf32>
      %c2 = arith.constant 2 : index
      %26 = memref.load %arg12[%c2] : memref<3xf32, #tpu.memory_space<smem>>
      %27 = vector.broadcast %26 : f32 to vector<128x128xf32>
      %28 = arith.mulf %16, %27 : vector<128x128xf32>
      %29 = math.exp %28 : vector<128x128xf32>
      %30 = arith.addf %25, %29 : vector<128x128xf32>
      %c0_11 = arith.constant 0 : index
      %c0_12 = arith.constant 0 : index
      %31 = vector.load %arg4[%c0_11, %c0_12] : memref<128x128xf32, #tpu.memory_space<vmem>>, vector<128x128xf32>
      %c0_13 = arith.constant 0 : index
      %c0_14 = arith.constant 0 : index
      %32 = vector.load %arg5[%c0_13, %c0_14] : memref<128x128xf32, #tpu.memory_space<vmem>>, vector<128x128xf32>
      %cst_15 = arith.constant dense<0.000000e+00> : vector<128x128xf32>
      %33 = tpu.matmul %31, %32, %cst_15 {dimension_numbers = #tpu.dot_dimension_numbers<[1], [1], [0], [0], [0, 0, 1, 0], [], []>} : vector<128x128xf32>, vector<128x128xf32>, vector<128x128xf32> -> vector<128x128xf32>
      %c0_16 = arith.constant 0 : index
      %c0_17 = arith.constant 0 : index
      %34 = vector.load %arg8[%c0_16, %c0_17] : memref<128x1xf32, #tpu.memory_space<vmem>>, vector<128x1xf32>
      %cst_18 = arith.constant 2.000000e+00 : f32
      %35 = vector.broadcast %cst_18 : f32 to vector<128x128xf32>
      %36 = arith.mulf %35, %33 : vector<128x128xf32>
      %37 = vector.broadcast %34 : vector<128x1xf32> to vector<128x128xf32>
      %38 = arith.subf %37, %36 : vector<128x128xf32>
      %c0_19 = arith.constant 0 : index
      %c0_20 = arith.constant 0 : index
      %39 = vector.load %arg9[%c0_19, %c0_20] : memref<1x128xf32, #tpu.memory_space<vmem>>, vector<1x128xf32>
      %40 = vector.broadcast %39 : vector<1x128xf32> to vector<128x128xf32>
      %41 = arith.addf %38, %40 : vector<128x128xf32>
      %c0_21 = arith.constant 0 : index
      %42 = memref.load %arg13[%c0_21] : memref<2xf32, #tpu.memory_space<smem>>
      %43 = vector.broadcast %42 : f32 to vector<128x128xf32>
      %44 = arith.mulf %41, %43 : vector<128x128xf32>
      %45 = math.exp %44 : vector<128x128xf32>
      %c1_22 = arith.constant 1 : index
      %46 = memref.load %arg13[%c1_22] : memref<2xf32, #tpu.memory_space<smem>>
      %47 = vector.broadcast %46 : f32 to vector<128x128xf32>
      %48 = arith.mulf %41, %47 : vector<128x128xf32>
      %49 = math.exp %48 : vector<128x128xf32>
      %50 = arith.addf %45, %49 : vector<128x128xf32>
      %51 = arith.mulf %30, %50 : vector<128x128xf32>
      %c0_23 = arith.constant 0 : index
      %c0_24 = arith.constant 0 : index
      %52 = vector.load %arg10[%c0_23, %c0_24] : memref<128x1xf32, #tpu.memory_space<vmem>>, vector<128x1xf32>
      %c0_25 = arith.constant 0 : index
      %c0_26 = arith.constant 0 : index
      %53 = vector.load %arg11[%c0_25, %c0_26] : memref<1x128xf32, #tpu.memory_space<vmem>>, vector<1x128xf32>
      %54 = vector.broadcast %52 : vector<128x1xf32> to vector<128x128xf32>
      %55 = vector.broadcast %53 : vector<1x128xf32> to vector<128x128xf32>
      %56 = arith.mulf %54, %55 : vector<128x128xf32>
      %57 = arith.mulf %51, %56 : vector<128x128xf32>
      %58 = arith.cmpi sgt, %arg1, %arg0 : i32
      %59 = arith.extui %58 : i1 to i32
      %60 = arith.sitofp %59 : i32 to f32
      %cst_27 = arith.constant 1.000000e+00 : f32
      %61 = arith.addf %cst_27, %60 : f32
      %c0_28 = arith.constant 0 : index
      %c0_29 = arith.constant 0 : index
      %c0_30 = arith.constant 0 : index
      %62 = vector.load %arg14[%c0_28, %c0_29, %c0_30] : memref<1x1x128xf32, #tpu.memory_space<vmem>>, vector<1x1x128xf32>
      %63 = vector.shape_cast %57 : vector<128x128xf32> to vector<1x128x128xf32>
      %cst_31 = arith.constant dense<0.000000e+00> : vector<1xf32>
      %64 = vector.multi_reduction <add>, %63, %cst_31 [1, 2] : vector<1x128x128xf32> to vector<1xf32>
      %65 = vector.shape_cast %64 : vector<1xf32> to vector<1x1x1xf32>
      %66 = vector.extract %65[0, 0, 0] : f32 from vector<1x1x1xf32>
      %67 = arith.mulf %61, %66 : f32
      %68 = vector.broadcast %67 : f32 to vector<1x1x128xf32>
      %69 = arith.addf %62, %68 : vector<1x1x128xf32>
      %c0_32 = arith.constant 0 : index
      %c0_33 = arith.constant 0 : index
      %c0_34 = arith.constant 0 : index
      %70 = vector.load %arg14[%c0_32, %c0_33, %c0_34] : memref<1x1x128xf32, #tpu.memory_space<vmem>>, vector<1x1x128xf32>
      tpu.vector_store %arg14[%c0_32, %c0_33, %c0_34], %69 {strides = array<i32>} : memref<1x1x128xf32, #tpu.memory_space<vmem>>, vector<1x1x128xf32>,
    } else {
    }
    return
  }
  func.func @transform_0(%arg0: i32, %arg1: i32) -> (i32, i32) {
    %c0_i32 = arith.constant 0 : i32
    %c0_i32_0 = arith.constant 0 : i32
    return %arg0, %c0_i32 : i32, i32
  }
  func.func @transform_1(%arg0: i32, %arg1: i32) -> (i32, i32) {
    %0 = arith.maxsi %arg0, %arg1 : i32
    %c0_i32 = arith.constant 0 : i32
    %c0_i32_0 = arith.constant 0 : i32
    return %0, %c0_i32 : i32, i32
  }
  func.func @transform_2(%arg0: i32, %arg1: i32) -> (i32, i32) {
    %c0_i32 = arith.constant 0 : i32
    %c0_i32_0 = arith.constant 0 : i32
    return %arg0, %c0_i32 : i32, i32
  }
  func.func @transform_3(%arg0: i32, %arg1: i32) -> (i32, i32) {
    %0 = arith.maxsi %arg0, %arg1 : i32
    %c0_i32 = arith.constant 0 : i32
    %c0_i32_0 = arith.constant 0 : i32
    return %0, %c0_i32 : i32, i32
  }
  func.func @transform_4(%arg0: i32, %arg1: i32) -> (i32, i32) {
    %c0_i32 = arith.constant 0 : i32
    %c0_i32_0 = arith.constant 0 : i32
    return %arg0, %c0_i32 : i32, i32
  }
  func.func @transform_5(%arg0: i32, %arg1: i32) -> (i32, i32) {
    %0 = arith.maxsi %arg0, %arg1 : i32
    %c0_i32 = arith.constant 0 : i32
    %c0_i32_0 = arith.constant 0 : i32
    return %c0_i32, %0 : i32, i32
  }
  func.func @transform_6(%arg0: i32, %arg1: i32) -> (i32, i32) {
    %c0_i32 = arith.constant 0 : i32
    %c0_i32_0 = arith.constant 0 : i32
    return %arg0, %c0_i32 : i32, i32
  }
  func.func @transform_7(%arg0: i32, %arg1: i32) -> (i32, i32) {
    %0 = arith.maxsi %arg0, %arg1 : i32
    %c0_i32 = arith.constant 0 : i32
    %c0_i32_0 = arith.constant 0 : i32
    return %c0_i32, %0 : i32, i32
  }
  func.func @transform_8(%arg0: i32, %arg1: i32) -> (i32, i32) {
    %c0_i32 = arith.constant 0 : i32
    %c0_i32_0 = arith.constant 0 : i32
    return %arg0, %c0_i32 : i32, i32
  }
  func.func @transform_9(%arg0: i32, %arg1: i32) -> (i32, i32) {
    %0 = arith.maxsi %arg0, %arg1 : i32
    %c0_i32 = arith.constant 0 : i32
    %c0_i32_0 = arith.constant 0 : i32
    return %c0_i32, %0 : i32, i32
  }
  func.func @transform_10(%arg0: i32, %arg1: i32) -> i32 {
    %c0_i32 = arith.constant 0 : i32
    %c0_i32_0 = arith.constant 0 : i32
    return %c0_i32 : i32
  }
  func.func @transform_11(%arg0: i32, %arg1: i32) -> i32 {
    %c0_i32 = arith.constant 0 : i32
    %c0_i32_0 = arith.constant 0 : i32
    return %c0_i32 : i32
  }
  func.func @transform_12(%arg0: i32, %arg1: i32) -> (i32, i32, i32) {
    %c0_i32 = arith.constant 0 : i32
    %c0_i32_0 = arith.constant 0 : i32
    %c0_i32_1 = arith.constant 0 : i32
    return %arg0, %c0_i32, %c0_i32_0 : i32, i32, i32
  }
}

</mosaic_0001>

<llo_original>
// kernel: tpu_custom_call.1
$region0: #{tpu_custom_call.1}
  #allocation0 [shape = 'u32[]', space=smem, size = 0x4, offset = 0x4, fixed_abs, tag = 'smem constant byte address 0x4 - core index']
  #allocation1 [shape = 'u32[144,128]{1,0:T(1,128)}', space=vmem, size = 0x12000, scoped, tag = 'internal scratch']
  %s0 = inlined_call_operand.vmem [shape: f32[128,128], index: 0, kind: input, shape index: {}]
  %s1 = inlined_call_operand.vmem [shape: f32[128,128], index: 1, kind: input, shape index: {}]
  %s2 = inlined_call_operand.vmem [shape: f32[128,128], index: 2, kind: input, shape index: {}]
  %s3 = inlined_call_operand.hbm [shape: f32[128,128], index: 3, kind: input, shape index: {}]
  %s4 = inlined_call_operand.vmem [shape: f32[128,1], index: 4, kind: input, shape index: {}]
  %s5 = inlined_call_operand.vmem [shape: f32[1,128], index: 5, kind: input, shape index: {}]
  %s6 = inlined_call_operand.vmem [shape: f32[128,1], index: 6, kind: input, shape index: {}]
  %s7 = inlined_call_operand.vmem [shape: f32[1,128], index: 7, kind: input, shape index: {}]
  %s8 = inlined_call_operand.vmem [shape: f32[128,1], index: 8, kind: input, shape index: {}]
  %s9 = inlined_call_operand.vmem [shape: f32[1,128], index: 9, kind: input, shape index: {}]
  %s10 = inlined_call_operand.vmem [shape: f32[3], index: 10, kind: input, shape index: {}]
  %s11 = inlined_call_operand.vmem [shape: f32[2], index: 11, kind: input, shape index: {}]
  %s12 = inlined_call_operand.hbm [shape: f32[1,1,128], index: 12, kind: output, shape index: {}]
  %s13 = sld [smem:[#allocation0]]
  $region78: #{tpu_custom_call.1} parent=0
    _
  %s15 = ssub.s32 1, %s13
  %s16 = scalar_select 0, %s15, %s13
  $region1: #{tpu_custom_call.1} parent=0
    #allocation2 [shape = 'u8[65536]{0}', space=vmem, size = 0x10000, scoped, tag = 'input window, operand 3, single buffered']
    #allocation3 [shape = 's32[1]{0}', space=sflag, size = 0x4, scoped, tag = 'scoped memory for tpu_custom_call.1']
    #allocation4 [shape = 's32[1]{0}', space=sflag, size = 0x4, scoped, tag = 'scoped memory for tpu_custom_call.1']
    #allocation5 [shape = 's32[1]{0}', space=sflag, size = 0x4, scoped, tag = 'scoped memory for tpu_custom_call.1']
    #allocation6 [shape = 'u8[512]{0}', space=smem, size = 0x200, scoped, tag = 'input window, operand 10, single buffered']
    #allocation7 [shape = 'u8[512]{0}', space=smem, size = 0x200, scoped, tag = 'input window, operand 11, single buffered']
    #allocation8 [shape = 's32[1]{0}', space=sflag, size = 0x4, scoped, tag = 'scoped memory for tpu_custom_call.1']
    #allocation9 [shape = 'u8[512]{0}', space=vmem, size = 0x400, scoped, tag = 'output window, operand 0, single buffered']
    %17 = vsyncpa [#allocation3], 0
    %18 = vsyncpa [#allocation5], 0
    %19 = vsyncpa [#allocation8], 0
    %20 = vsyncpa [#allocation4], 0
    // Predicated region
    $region2: #{tpu_custom_call.1} parent=1 // pred_check
      _
    $region3: #{tpu_custom_call.1} parent=1 // pred_check_branch
      %22 = sbr.rel (0) target = $region5
    $region4: #{tpu_custom_call.1} parent=1 // pred_region
      _
    $region5: #{tpu_custom_call.1} parent=1 // pred_fallthru
      _
    // Predicated region
    $region6: #{tpu_custom_call.1} parent=1 // pred_check
      _
    $region7: #{tpu_custom_call.1} parent=1 // pred_check_branch
      %24 = sbr.rel (0) target = $region9
    $region8: #{tpu_custom_call.1} parent=1 // pred_region
      _
    $region9: #{tpu_custom_call.1} parent=1 // pred_fallthru
      _
    // Predicated region
    $region10: #{tpu_custom_call.1} parent=1 // pred_check
      _
    $region11: #{tpu_custom_call.1} parent=1 // pred_check_branch
      %26 = sbr.rel (0) target = $region13
    $region12: #{tpu_custom_call.1} parent=1 // pred_region
      _
    $region13: #{tpu_custom_call.1} parent=1 // pred_fallthru
      _
    // Predicated region
    $region14: #{tpu_custom_call.1} parent=1 // pred_check
      _
    $region15: #{tpu_custom_call.1} parent=1 // pred_check_branch
      %28 = sbr.rel (0) target = $region17
    $region16: #{tpu_custom_call.1} parent=1 // pred_region
      %s30 = ssub.s32 2048, 2048
      %31 = vsyncadd [#allocation3], %s30
      %s32 = sshll.u32 [#allocation2], 4
      %s33 = int_to_ptr.vmem [resolvable:$true] %s32
      %38 = dma.hbm_to_vmem [thread:$0]  %s3, 2048, %s33, [#allocation3], 128, 128, 8
    $region17: #{tpu_custom_call.1} parent=1 // pred_fallthru
      _
    // Predicated region
    $region18: #{tpu_custom_call.1} parent=1 // pred_check
      _
    $region19: #{tpu_custom_call.1} parent=1 // pred_check_branch
      %40 = sbr.rel (0) target = $region21
    $region20: #{tpu_custom_call.1} parent=1 // pred_region
      _
    $region21: #{tpu_custom_call.1} parent=1 // pred_fallthru
      _
    // Predicated region
    $region22: #{tpu_custom_call.1} parent=1 // pred_check
      _
    $region23: #{tpu_custom_call.1} parent=1 // pred_check_branch
      %42 = sbr.rel (0) target = $region25
    $region24: #{tpu_custom_call.1} parent=1 // pred_region
      _
    $region25: #{tpu_custom_call.1} parent=1 // pred_fallthru
      _
    // Predicated region
    $region26: #{tpu_custom_call.1} parent=1 // pred_check
      _
    $region27: #{tpu_custom_call.1} parent=1 // pred_check_branch
      %44 = sbr.rel (0) target = $region29
    $region28: #{tpu_custom_call.1} parent=1 // pred_region
      _
    $region29: #{tpu_custom_call.1} parent=1 // pred_fallthru
      _
    // Predicated region
    $region30: #{tpu_custom_call.1} parent=1 // pred_check
      _
    $region31: #{tpu_custom_call.1} parent=1 // pred_check_branch
      %46 = sbr.rel (0) target = $region33
    $region32: #{tpu_custom_call.1} parent=1 // pred_region
      _
    $region33: #{tpu_custom_call.1} parent=1 // pred_fallthru
      _
    // Predicated region
    $region34: #{tpu_custom_call.1} parent=1 // pred_check
      _
    $region35: #{tpu_custom_call.1} parent=1 // pred_check_branch
      %48 = sbr.rel (0) target = $region37
    $region36: #{tpu_custom_call.1} parent=1 // pred_region
      _
    $region37: #{tpu_custom_call.1} parent=1 // pred_fallthru
      _
    // Predicated region
    $region38: #{tpu_custom_call.1} parent=1 // pred_check
      _
    $region39: #{tpu_custom_call.1} parent=1 // pred_check_branch
      %50 = sbr.rel (0) target = $region41
    $region40: #{tpu_custom_call.1} parent=1 // pred_region
      _
    $region41: #{tpu_custom_call.1} parent=1 // pred_fallthru
      _
    // Predicated region
    $region42: #{tpu_custom_call.1} parent=1 // pred_check
      _
    $region43: #{tpu_custom_call.1} parent=1 // pred_check_branch
      %52 = sbr.rel (0) target = $region45
    $region44: #{tpu_custom_call.1} parent=1 // pred_region
      %s54 = ssub.s32 16, 16
      %55 = vsyncadd [#allocation5], %s54
      %s57 = sshll.u32 %s10, 4
      %s58 = int_to_ptr.vmem [resolvable:$true] %s57
      %60 = dma.vmem_to_smem %s58, 16, [#allocation6], [#allocation5]
    $region45: #{tpu_custom_call.1} parent=1 // pred_fallthru
      _
    // Predicated region
    $region46: #{tpu_custom_call.1} parent=1 // pred_check
      _
    $region47: #{tpu_custom_call.1} parent=1 // pred_check_branch
      %62 = sbr.rel (0) target = $region49
    $region48: #{tpu_custom_call.1} parent=1 // pred_region
      %s64 = ssub.s32 16, 16
      %65 = vsyncadd [#allocation8], %s64
      %s67 = sshll.u32 %s11, 4
      %s68 = int_to_ptr.vmem [resolvable:$true] %s67
      %70 = dma.vmem_to_smem %s68, 16, [#allocation7], [#allocation8]
    $region49: #{tpu_custom_call.1} parent=1 // pred_fallthru
      _
    // Predicated region
    $region50: #{tpu_custom_call.1} parent=1 // pred_check
      _
    $region51: #{tpu_custom_call.1} parent=1 // pred_check_branch
      %72 = sbr.rel (0) target = $region53
    $region52: #{tpu_custom_call.1} parent=1 // pred_region
      %73 = dma.done [#allocation3], 2048
    $region53: #{tpu_custom_call.1} parent=1 // pred_fallthru
      _
    // Predicated region
    $region54: #{tpu_custom_call.1} parent=1 // pred_check
      _
    $region55: #{tpu_custom_call.1} parent=1 // pred_check_branch
      %75 = sbr.rel (0) target = $region57
    $region56: #{tpu_custom_call.1} parent=1 // pred_region
      %76 = dma.done [#allocation5], 16
    $region57: #{tpu_custom_call.1} parent=1 // pred_fallthru
      _
    // Predicated region
    $region58: #{tpu_custom_call.1} parent=1 // pred_check
      _
    $region59: #{tpu_custom_call.1} parent=1 // pred_check_branch
      %78 = sbr.rel (0) target = $region61
    $region60: #{tpu_custom_call.1} parent=1 // pred_region
      %79 = dma.done [#allocation8], 16
    $region61: #{tpu_custom_call.1} parent=1 // pred_fallthru
      _
    %80 = sfence
    %p81 = scmp.eq.s32.totalorder 0, 0
    // Predicated region
    $region62: #{tpu_custom_call.1} parent=1 // pred_check
      %p82 = pneg %p81
    $region63: #{tpu_custom_call.1} parent=1 // pred_check_branch
      %84 = sbr.rel (%p82) target = $region65
    $region64: #{tpu_custom_call.1} parent=1 // pred_region
      %85 = vst [vmem:[#allocation9] sm:$0x1] 0.0
    $region65: #{tpu_custom_call.1} parent=1 // pred_fallthru
      _
    %p86 = scmp.ge.s32.totalorder 0, 0
    // Predicated region
    $region66: #{tpu_custom_call.1} parent=1 // pred_check
      %p87 = pneg %p86
    $region67: #{tpu_custom_call.1} parent=1 // pred_check_branch
      %89 = sbr.rel (%p87) target = $region69
    $region68: #{tpu_custom_call.1} parent=1 // pred_region
      %v90 = vld [vmem:[%s0] sm:$0xff]
      %v91 = vld [vmem:[%s0 + $0x8] sm:$0xff]
      %v92 = vld [vmem:[%s0 + $0x10] sm:$0xff]
      %v93 = vld [vmem:[%s0 + $0x18] sm:$0xff]
      %v94 = vld [vmem:[%s0 + $0x20] sm:$0xff]
      %v95 = vld [vmem:[%s0 + $0x28] sm:$0xff]
      %v96 = vld [vmem:[%s0 + $0x30] sm:$0xff]
      %v97 = vld [vmem:[%s0 + $0x38] sm:$0xff]
      %v98 = vld [vmem:[%s0 + $0x40] sm:$0xff]
      %v99 = vld [vmem:[%s0 + $0x48] sm:$0xff]
      %v100 = vld [vmem:[%s0 + $0x50] sm:$0xff]
      %v101 = vld [vmem:[%s0 + $0x58] sm:$0xff]
      %v102 = vld [vmem:[%s0 + $0x60] sm:$0xff]
      %v103 = vld [vmem:[%s0 + $0x68] sm:$0xff]
      %v104 = vld [vmem:[%s0 + $0x70] sm:$0xff]
      %v105 = vld [vmem:[%s0 + $0x78] sm:$0xff]
      %v106 = vld [vmem:[%s1] sm:$0xff]
      %v107 = vld [vmem:[%s1 + $0x8] sm:$0xff]
      %v108 = vld [vmem:[%s1 + $0x10] sm:$0xff]
      %v109 = vld [vmem:[%s1 + $0x18] sm:$0xff]
      %v110 = vld [vmem:[%s1 + $0x20] sm:$0xff]
      %v111 = vld [vmem:[%s1 + $0x28] sm:$0xff]
      %v112 = vld [vmem:[%s1 + $0x30] sm:$0xff]
      %v113 = vld [vmem:[%s1 + $0x38] sm:$0xff]
      %v114 = vld [vmem:[%s1 + $0x40] sm:$0xff]
      %v115 = vld [vmem:[%s1 + $0x48] sm:$0xff]
      %v116 = vld [vmem:[%s1 + $0x50] sm:$0xff]
      %v117 = vld [vmem:[%s1 + $0x58] sm:$0xff]
      %v118 = vld [vmem:[%s1 + $0x60] sm:$0xff]
      %v119 = vld [vmem:[%s1 + $0x68] sm:$0xff]
      %v120 = vld [vmem:[%s1 + $0x70] sm:$0xff]
      %v121 = vld [vmem:[%s1 + $0x78] sm:$0xff]
      %122 = vmatprep.subr.mxu0 0.0
      %123 = vmatpush1.xpose.msra.mxu0 %v106
      %124 = vmatprep.subr.mxu0 0.0
      %125 = vmatpush1.xpose.msra.mxu0 %v107
      %126 = vmatprep.subr.mxu0 0.0
      %127 = vmatpush1.xpose.msra.mxu0 %v108
      %128 = vmatprep.subr.mxu0 0.0
      %129 = vmatpush1.xpose.msra.mxu0 %v109
      %130 = vmatprep.subr.mxu0 0.0
      %131 = vmatpush1.xpose.msra.mxu0 %v110
      %132 = vmatprep.subr.mxu0 0.0
      %133 = vmatpush1.xpose.msra.mxu0 %v111
      %134 = vmatprep.subr.mxu0 0.0
      %135 = vmatpush1.xpose.msra.mxu0 %v112
      %136 = vmatprep.subr.mxu0 0.0
      %137 = vmatpush1.xpose.msra.mxu0 %v113
      %138 = vmatprep.subr.mxu0 0.0
      %139 = vmatpush1.xpose.msra.mxu0 %v114
      %140 = vmatprep.subr.mxu0 0.0
      %141 = vmatpush1.xpose.msra.mxu0 %v115
      %142 = vmatprep.subr.mxu0 0.0
      %143 = vmatpush1.xpose.msra.mxu0 %v116
      %144 = vmatprep.subr.mxu0 0.0
      %145 = vmatpush1.xpose.msra.mxu0 %v117
      %146 = vmatprep.subr.mxu0 0.0
      %147 = vmatpush1.xpose.msra.mxu0 %v118
      %148 = vmatprep.subr.mxu0 0.0
      %149 = vmatpush1.xpose.msra.mxu0 %v119
      %150 = vmatprep.subr.mxu0 0.0
      %151 = vmatpush1.xpose.msra.mxu0 %v120
      %152 = vmatprep.subr.mxu0 0.0
      %153 = vmatpush1.xpose.msra.mxu0 %v121
      %154 = vmatprep.subr.mxu0 0.0
      %155 = vmatpush1.xpose.msra.mxu0 0.0
      %156 = vmatprep.subr.mxu0 0.0
      %157 = vmatpush1.xpose.msra.mxu0 0.0
      %158 = vmatprep.subr.mxu0 0.0
      %159 = vmatpush1.xpose.msra.mxu0 0.0
      %160 = vmatprep.subr.mxu0 0.0
      %161 = vmatpush1.xpose.msra.mxu0 0.0
      %162 = vmatprep.subr.mxu0 0.0
      %163 = vmatpush1.xpose.msra.mxu0 0.0
      %164 = vmatprep.subr.mxu0 0.0
      %165 = vmatpush1.xpose.msra.mxu0 0.0
      %166 = vmatprep.subr.mxu0 0.0
      %167 = vmatpush1.xpose.msra.mxu0 0.0
      %168 = vmatprep.subr.mxu0 0.0
      %169 = vmatpush1.xpose.msra.mxu0 0.0
      %170 = vmatprep.subr.mxu0 0.0
      %171 = vmatpush1.xpose.msra.mxu0 0.0
      %172 = vmatprep.subr.mxu0 0.0
      %173 = vmatpush1.xpose.msra.mxu0 0.0
      %174 = vmatprep.subr.mxu0 0.0
      %175 = vmatpush1.xpose.msra.mxu0 0.0
      %176 = vmatprep.subr.mxu0 0.0
      %177 = vmatpush1.xpose.msra.mxu0 0.0
      %178 = vmatprep.subr.mxu0 0.0
      %179 = vmatpush1.xpose.msra.mxu0 0.0
      %180 = vmatprep.subr.mxu0 0.0
      %181 = vmatpush1.xpose.msra.mxu0 0.0
      %182 = vmatprep.subr.mxu0 0.0
      %183 = vmatpush1.xpose.msra.mxu0 0.0
      %184 = vmatprep.subr.mxu0 0.0
      %185 = vmatpush1.xpose.msra.mxu0 0.0
      %186 = vmatprep.mubr.f32.mxu0 0.0
      %187 = vmatmul.mubr.f32.gmra.mrb[0].mxu0 %v90
      %v188 = vpop.f32.mrb[0].mxu0
      %v189 = vadd.f32 0.0, %v188
      %v190 = vpop.f32.mrb[0].mxu0
      %191 = vmatprep.mubr.f32.mxu0 0.0
      %192 = vmatmul.mubr.f32.gmra.mrb[0].mxu0 %v91
      %v193 = vpop.f32.mrb[0].mxu0
      %v194 = vadd.f32 0.0, %v193
      %v195 = vpop.f32.mrb[0].mxu0
      %196 = vmatprep.mubr.f32.mxu0 0.0
      %197 = vmatmul.mubr.f32.gmra.mrb[0].mxu0 %v92
      %v198 = vpop.f32.mrb[0].mxu0
      %v199 = vadd.f32 0.0, %v198
      %v200 = vpop.f32.mrb[0].mxu0
      %201 = vmatprep.mubr.f32.mxu0 0.0
      %202 = vmatmul.mubr.f32.gmra.mrb[0].mxu0 %v93
      %v203 = vpop.f32.mrb[0].mxu0
      %v204 = vadd.f32 0.0, %v203
      %v205 = vpop.f32.mrb[0].mxu0
      %206 = vmatprep.mubr.f32.mxu0 0.0
      %207 = vmatmul.mubr.f32.gmra.mrb[0].mxu0 %v94
      %v208 = vpop.f32.mrb[0].mxu0
      %v209 = vadd.f32 0.0, %v208
      %v210 = vpop.f32.mrb[0].mxu0
      %211 = vmatprep.mubr.f32.mxu0 0.0
      %212 = vmatmul.mubr.f32.gmra.mrb[0].mxu0 %v95
      %v213 = vpop.f32.mrb[0].mxu0
      %v214 = vadd.f32 0.0, %v213
      %v215 = vpop.f32.mrb[0].mxu0
      %216 = vmatprep.mubr.f32.mxu0 0.0
      %217 = vmatmul.mubr.f32.gmra.mrb[0].mxu0 %v96
      %v218 = vpop.f32.mrb[0].mxu0
      %v219 = vadd.f32 0.0, %v218
      %v220 = vpop.f32.mrb[0].mxu0
      %221 = vmatprep.mubr.f32.mxu0 0.0
      %222 = vmatmul.mubr.f32.gmra.mrb[0].mxu0 %v97
      %v223 = vpop.f32.mrb[0].mxu0
      %v224 = vadd.f32 0.0, %v223
      %v225 = vpop.f32.mrb[0].mxu0
      %226 = vmatprep.mubr.f32.mxu0 0.0
      %227 = vmatmul.mubr.f32.gmra.mrb[0].mxu0 %v98
      %v228 = vpop.f32.mrb[0].mxu0
      %v229 = vadd.f32 0.0, %v228
      %v230 = vpop.f32.mrb[0].mxu0
      %231 = vmatprep.mubr.f32.mxu0 0.0
      %232 = vmatmul.mubr.f32.gmra.mrb[0].mxu0 %v99
      %v233 = vpop.f32.mrb[0].mxu0
      %v234 = vadd.f32 0.0, %v233
      %v235 = vpop.f32.mrb[0].mxu0
      %236 = vmatprep.mubr.f32.mxu0 0.0
      %237 = vmatmul.mubr.f32.gmra.mrb[0].mxu0 %v100
      %v238 = vpop.f32.mrb[0].mxu0
      %v239 = vadd.f32 0.0, %v238
      %v240 = vpop.f32.mrb[0].mxu0
      %241 = vmatprep.mubr.f32.mxu0 0.0
      %242 = vmatmul.mubr.f32.gmra.mrb[0].mxu0 %v101
      %v243 = vpop.f32.mrb[0].mxu0
      %v244 = vadd.f32 0.0, %v243
      %v245 = vpop.f32.mrb[0].mxu0
      %246 = vmatprep.mubr.f32.mxu0 0.0
      %247 = vmatmul.mubr.f32.gmra.mrb[0].mxu0 %v102
      %v248 = vpop.f32.mrb[0].mxu0
      %v249 = vadd.f32 0.0, %v248
      %v250 = vpop.f32.mrb[0].mxu0
      %251 = vmatprep.mubr.f32.mxu0 0.0
      %252 = vmatmul.mubr.f32.gmra.mrb[0].mxu0 %v103
      %v253 = vpop.f32.mrb[0].mxu0
      %v254 = vadd.f32 0.0, %v253
      %v255 = vpop.f32.mrb[0].mxu0
      %256 = vmatprep.mubr.f32.mxu0 0.0
      %257 = vmatmul.mubr.f32.gmra.mrb[0].mxu0 %v104
      %v258 = vpop.f32.mrb[0].mxu0
      %v259 = vadd.f32 0.0, %v258
      %v260 = vpop.f32.mrb[0].mxu0
      %261 = vmatprep.mubr.f32.mxu0 0.0
      %262 = vmatmul.mubr.f32.gmra.mrb[0].mxu0 %v105
      %v263 = vpop.f32.mrb[0].mxu0
      %v264 = vadd.f32 0.0, %v263
      %v265 = vpop.f32.mrb[0].mxu0
      %266 = vdwg.mxu0
      %v267 = vld [vmem:[%s4] sm:$0xff]
      %v268 = vld [vmem:[%s4 + $0x8] sm:$0xff]
      %v269 = vld [vmem:[%s4 + $0x10] sm:$0xff]
      %v270 = vld [vmem:[%s4 + $0x18] sm:$0xff]
      %v271 = vld [vmem:[%s4 + $0x20] sm:$0xff]
      %v272 = vld [vmem:[%s4 + $0x28] sm:$0xff]
      %v273 = vld [vmem:[%s4 + $0x30] sm:$0xff]
      %v274 = vld [vmem:[%s4 + $0x38] sm:$0xff]
      %v275 = vld [vmem:[%s4 + $0x40] sm:$0xff]
      %v276 = vld [vmem:[%s4 + $0x48] sm:$0xff]
      %v277 = vld [vmem:[%s4 + $0x50] sm:$0xff]
      %v278 = vld [vmem:[%s4 + $0x58] sm:$0xff]
      %v279 = vld [vmem:[%s4 + $0x60] sm:$0xff]
      %v280 = vld [vmem:[%s4 + $0x68] sm:$0xff]
      %v281 = vld [vmem:[%s4 + $0x70] sm:$0xff]
      %v282 = vld [vmem:[%s4 + $0x78] sm:$0xff]
      %v283 = vmul.f32 %v189, 2.0
      %v284 = vmul.f32 %v194, 2.0
      %v285 = vmul.f32 %v199, 2.0
      %v286 = vmul.f32 %v204, 2.0
      %v287 = vmul.f32 %v209, 2.0
      %v288 = vmul.f32 %v214, 2.0
      %v289 = vmul.f32 %v219, 2.0
      %v290 = vmul.f32 %v224, 2.0
      %v291 = vmul.f32 %v229, 2.0
      %v292 = vmul.f32 %v234, 2.0
      %v293 = vmul.f32 %v239, 2.0
      %v294 = vmul.f32 %v244, 2.0
      %v295 = vmul.f32 %v249, 2.0
      %v296 = vmul.f32 %v254, 2.0
      %v297 = vmul.f32 %v259, 2.0
      %v298 = vmul.f32 %v264, 2.0
      %300 = vset.pattern.permute.xlu0 0
      %301 = vperm.xlu0 %300, %v267
      %v302 = vpop.permute.xlu0 %301
      %305 = vset.pattern.permute.xlu0 0
      %306 = vperm.xlu0 %305, %v268
      %v307 = vpop.permute.xlu0 %306
      %310 = vset.pattern.permute.xlu0 0
      %311 = vperm.xlu0 %310, %v269
      %v312 = vpop.permute.xlu0 %311
      %315 = vset.pattern.permute.xlu0 0
      %316 = vperm.xlu0 %315, %v270
      %v317 = vpop.permute.xlu0 %316
      %320 = vset.pattern.permute.xlu0 0
      %321 = vperm.xlu0 %320, %v271
      %v322 = vpop.permute.xlu0 %321
      %325 = vset.pattern.permute.xlu0 0
      %326 = vperm.xlu0 %325, %v272
      %v327 = vpop.permute.xlu0 %326
      %330 = vset.pattern.permute.xlu0 0
      %331 = vperm.xlu0 %330, %v273
      %v332 = vpop.permute.xlu0 %331
      %335 = vset.pattern.permute.xlu0 0
      %336 = vperm.xlu0 %335, %v274
      %v337 = vpop.permute.xlu0 %336
      %340 = vset.pattern.permute.xlu0 0
      %341 = vperm.xlu0 %340, %v275
      %v342 = vpop.permute.xlu0 %341
      %345 = vset.pattern.permute.xlu0 0
      %346 = vperm.xlu0 %345, %v276
      %v347 = vpop.permute.xlu0 %346
      %350 = vset.pattern.permute.xlu0 0
      %351 = vperm.xlu0 %350, %v277
      %v352 = vpop.permute.xlu0 %351
      %355 = vset.pattern.permute.xlu0 0
      %356 = vperm.xlu0 %355, %v278
      %v357 = vpop.permute.xlu0 %356
      %360 = vset.pattern.permute.xlu0 0
      %361 = vperm.xlu0 %360, %v279
      %v362 = vpop.permute.xlu0 %361
      %365 = vset.pattern.permute.xlu0 0
      %366 = vperm.xlu0 %365, %v280
      %v367 = vpop.permute.xlu0 %366
      %370 = vset.pattern.permute.xlu0 0
      %371 = vperm.xlu0 %370, %v281
      %v372 = vpop.permute.xlu0 %371
      %375 = vset.pattern.permute.xlu0 0
      %376 = vperm.xlu0 %375, %v282
      %v377 = vpop.permute.xlu0 %376
      %v379 = vsub.f32 %v302, %v283
      %v380 = vsub.f32 %v307, %v284
      %v381 = vsub.f32 %v312, %v285
      %v382 = vsub.f32 %v317, %v286
      %v383 = vsub.f32 %v322, %v287
      %v384 = vsub.f32 %v327, %v288
      %v385 = vsub.f32 %v332, %v289
      %v386 = vsub.f32 %v337, %v290
      %v387 = vsub.f32 %v342, %v291
      %v388 = vsub.f32 %v347, %v292
      %v389 = vsub.f32 %v352, %v293
      %v390 = vsub.f32 %v357, %v294
      %v391 = vsub.f32 %v362, %v295
      %v392 = vsub.f32 %v367, %v296
      %v393 = vsub.f32 %v372, %v297
      %v394 = vsub.f32 %v377, %v298
      %v395 = vld [vmem:[%s5] sm:$0x1]
      %v397 = vlaneseq
      %v398 = vshrl.u32 %v397, 7
      %v399 = vsub.s32 0, %v398
      %v400 = vrot.slane %v395, %v399
      %v402 = vadd.f32 %v379, %v400
      %v403 = vadd.f32 %v380, %v400
      %v404 = vadd.f32 %v381, %v400
      %v405 = vadd.f32 %v382, %v400
      %v406 = vadd.f32 %v383, %v400
      %v407 = vadd.f32 %v384, %v400
      %v408 = vadd.f32 %v385, %v400
      %v409 = vadd.f32 %v386, %v400
      %v410 = vadd.f32 %v387, %v400
      %v411 = vadd.f32 %v388, %v400
      %v412 = vadd.f32 %v389, %v400
      %v413 = vadd.f32 %v390, %v400
      %v414 = vadd.f32 %v391, %v400
      %v415 = vadd.f32 %v392, %v400
      %v416 = vadd.f32 %v393, %v400
      %v417 = vadd.f32 %v394, %v400
      %s418 = sld [smem:[#allocation6]]
      %v419 = vstv %s418
      %v420 = vmul.f32 %v402, %v419
      %v421 = vmul.f32 %v403, %v419
      %v422 = vmul.f32 %v404, %v419
      %v423 = vmul.f32 %v405, %v419
      %v424 = vmul.f32 %v406, %v419
      %v425 = vmul.f32 %v407, %v419
      %v426 = vmul.f32 %v408, %v419
      %v427 = vmul.f32 %v409, %v419
      %v428 = vmul.f32 %v410, %v419
      %v429 = vmul.f32 %v411, %v419
      %v430 = vmul.f32 %v412, %v419
      %v431 = vmul.f32 %v413, %v419
      %v432 = vmul.f32 %v414, %v419
      %v433 = vmul.f32 %v415, %v419
      %v434 = vmul.f32 %v416, %v419
      %v435 = vmul.f32 %v417, %v419
      %v436 = vmul.f32 %v420, 1.442695
      %v437 = vpow.pop %v436
      %v438 = vmul.f32 %v421, 1.442695
      %v439 = vpow.pop %v438
      %v440 = vmul.f32 %v422, 1.442695
      %v441 = vpow.pop %v440
      %v442 = vmul.f32 %v423, 1.442695
      %v443 = vpow.pop %v442
      %v444 = vmul.f32 %v424, 1.442695
      %v445 = vpow.pop %v444
      %v446 = vmul.f32 %v425, 1.442695
      %v447 = vpow.pop %v446
      %v448 = vmul.f32 %v426, 1.442695
      %v449 = vpow.pop %v448
      %v450 = vmul.f32 %v427, 1.442695
      %v451 = vpow.pop %v450
      %v452 = vmul.f32 %v428, 1.442695
      %v453 = vpow.pop %v452
      %v454 = vmul.f32 %v429, 1.442695
      %v455 = vpow.pop %v454
      %v456 = vmul.f32 %v430, 1.442695
      %v457 = vpow.pop %v456
      %v458 = vmul.f32 %v431, 1.442695
      %v459 = vpow.pop %v458
      %v460 = vmul.f32 %v432, 1.442695
      %v461 = vpow.pop %v460
      %v462 = vmul.f32 %v433, 1.442695
      %v463 = vpow.pop %v462
      %v464 = vmul.f32 %v434, 1.442695
      %v465 = vpow.pop %v464
      %v466 = vmul.f32 %v435, 1.442695
      %v467 = vpow.pop %v466
      %s468 = sld [smem:[#allocation6 + $0x1]]
      %v469 = vstv %s468
      %v470 = vmul.f32 %v402, %v469
      %v471 = vmul.f32 %v403, %v469
      %v472 = vmul.f32 %v404, %v469
      %v473 = vmul.f32 %v405, %v469
      %v474 = vmul.f32 %v406, %v469
      %v475 = vmul.f32 %v407, %v469
      %v476 = vmul.f32 %v408, %v469
      %v477 = vmul.f32 %v409, %v469
      %v478 = vmul.f32 %v410, %v469
      %v479 = vmul.f32 %v411, %v469
      %v480 = vmul.f32 %v412, %v469
      %v481 = vmul.f32 %v413, %v469
      %v482 = vmul.f32 %v414, %v469
      %v483 = vmul.f32 %v415, %v469
      %v484 = vmul.f32 %v416, %v469
      %v485 = vmul.f32 %v417, %v469
      %v486 = vmul.f32 %v470, 1.442695
      %v487 = vpow.pop %v486
      %v488 = vmul.f32 %v471, 1.442695
      %v489 = vpow.pop %v488
      %v490 = vmul.f32 %v472, 1.442695
      %v491 = vpow.pop %v490
      %v492 = vmul.f32 %v473, 1.442695
      %v493 = vpow.pop %v492
      %v494 = vmul.f32 %v474, 1.442695
      %v495 = vpow.pop %v494
      %v496 = vmul.f32 %v475, 1.442695
      %v497 = vpow.pop %v496
      %v498 = vmul.f32 %v476, 1.442695
      %v499 = vpow.pop %v498
      %v500 = vmul.f32 %v477, 1.442695
      %v501 = vpow.pop %v500
      %v502 = vmul.f32 %v478, 1.442695
      %v503 = vpow.pop %v502
      %v504 = vmul.f32 %v479, 1.442695
      %v505 = vpow.pop %v504
      %v506 = vmul.f32 %v480, 1.442695
      %v507 = vpow.pop %v506
      %v508 = vmul.f32 %v481, 1.442695
      %v509 = vpow.pop %v508
      %v510 = vmul.f32 %v482, 1.442695
      %v511 = vpow.pop %v510
      %v512 = vmul.f32 %v483, 1.442695
      %v513 = vpow.pop %v512
      %v514 = vmul.f32 %v484, 1.442695
      %v515 = vpow.pop %v514
      %v516 = vmul.f32 %v485, 1.442695
      %v517 = vpow.pop %v516
      %v518 = vadd.f32 %v437, %v487
      %v519 = vadd.f32 %v439, %v489
      %v520 = vadd.f32 %v441, %v491
      %v521 = vadd.f32 %v443, %v493
      %v522 = vadd.f32 %v445, %v495
      %v523 = vadd.f32 %v447, %v497
      %v524 = vadd.f32 %v449, %v499
      %v525 = vadd.f32 %v451, %v501
      %v526 = vadd.f32 %v453, %v503
      %v527 = vadd.f32 %v455, %v505
      %v528 = vadd.f32 %v457, %v507
      %v529 = vadd.f32 %v459, %v509
      %v530 = vadd.f32 %v461, %v511
      %v531 = vadd.f32 %v463, %v513
      %v532 = vadd.f32 %v465, %v515
      %v533 = vadd.f32 %v467, %v517
      %s534 = sld [smem:[#allocation6 + $0x2]]
      %v535 = vstv %s534
      %v536 = vmul.f32 %v402, %v535
      %v537 = vmul.f32 %v403, %v535
      %v538 = vmul.f32 %v404, %v535
      %v539 = vmul.f32 %v405, %v535
      %v540 = vmul.f32 %v406, %v535
      %v541 = vmul.f32 %v407, %v535
      %v542 = vmul.f32 %v408, %v535
      %v543 = vmul.f32 %v409, %v535
      %v544 = vmul.f32 %v410, %v535
      %v545 = vmul.f32 %v411, %v535
      %v546 = vmul.f32 %v412, %v535
      %v547 = vmul.f32 %v413, %v535
      %v548 = vmul.f32 %v414, %v535
      %v549 = vmul.f32 %v415, %v535
      %v550 = vmul.f32 %v416, %v535
      %v551 = vmul.f32 %v417, %v535
      %v552 = vmul.f32 %v536, 1.442695
      %v553 = vpow.pop %v552
      %v554 = vmul.f32 %v537, 1.442695
      %v555 = vpow.pop %v554
      %v556 = vmul.f32 %v538, 1.442695
      %v557 = vpow.pop %v556
      %v558 = vmul.f32 %v539, 1.442695
      %v559 = vpow.pop %v558
      %v560 = vmul.f32 %v540, 1.442695
      %v561 = vpow.pop %v560
      %v562 = vmul.f32 %v541, 1.442695
      %v563 = vpow.pop %v562
      %v564 = vmul.f32 %v542, 1.442695
      %v565 = vpow.pop %v564
      %v566 = vmul.f32 %v543, 1.442695
      %v567 = vpow.pop %v566
      %v568 = vmul.f32 %v544, 1.442695
      %v569 = vpow.pop %v568
      %v570 = vmul.f32 %v545, 1.442695
      %v571 = vpow.pop %v570
      %v572 = vmul.f32 %v546, 1.442695
      %v573 = vpow.pop %v572
      %v574 = vmul.f32 %v547, 1.442695
      %v575 = vpow.pop %v574
      %v576 = vmul.f32 %v548, 1.442695
      %v577 = vpow.pop %v576
      %v578 = vmul.f32 %v549, 1.442695
      %v579 = vpow.pop %v578
      %v580 = vmul.f32 %v550, 1.442695
      %v581 = vpow.pop %v580
      %v582 = vmul.f32 %v551, 1.442695
      %v583 = vpow.pop %v582
      %v584 = vadd.f32 %v518, %v553
      %v585 = vadd.f32 %v519, %v555
      %v586 = vadd.f32 %v520, %v557
      %v587 = vadd.f32 %v521, %v559
      %v588 = vadd.f32 %v522, %v561
      %v589 = vadd.f32 %v523, %v563
      %v590 = vadd.f32 %v524, %v565
      %v591 = vadd.f32 %v525, %v567
      %v592 = vadd.f32 %v526, %v569
      %v593 = vadd.f32 %v527, %v571
      %v594 = vadd.f32 %v528, %v573
      %v595 = vadd.f32 %v529, %v575
      %v596 = vadd.f32 %v530, %v577
      %v597 = vadd.f32 %v531, %v579
      %v598 = vadd.f32 %v532, %v581
      %v599 = vadd.f32 %v533, %v583
      %v600 = vld [vmem:[%s2] sm:$0xff]
      %v601 = vld [vmem:[%s2 + $0x8] sm:$0xff]
      %v602 = vld [vmem:[%s2 + $0x10] sm:$0xff]
      %v603 = vld [vmem:[%s2 + $0x18] sm:$0xff]
      %v604 = vld [vmem:[%s2 + $0x20] sm:$0xff]
      %v605 = vld [vmem:[%s2 + $0x28] sm:$0xff]
      %v606 = vld [vmem:[%s2 + $0x30] sm:$0xff]
      %v607 = vld [vmem:[%s2 + $0x38] sm:$0xff]
      %v608 = vld [vmem:[%s2 + $0x40] sm:$0xff]
      %v609 = vld [vmem:[%s2 + $0x48] sm:$0xff]
      %v610 = vld [vmem:[%s2 + $0x50] sm:$0xff]
      %v611 = vld [vmem:[%s2 + $0x58] sm:$0xff]
      %v612 = vld [vmem:[%s2 + $0x60] sm:$0xff]
      %v613 = vld [vmem:[%s2 + $0x68] sm:$0xff]
      %v614 = vld [vmem:[%s2 + $0x70] sm:$0xff]
      %v615 = vld [vmem:[%s2 + $0x78] sm:$0xff]
      %v616 = vld [vmem:[#allocation2] sm:$0xff]
      %v617 = vld [vmem:[#allocation2 + $0x8] sm:$0xff]
      %v618 = vld [vmem:[#allocation2 + $0x10] sm:$0xff]
      %v619 = vld [vmem:[#allocation2 + $0x18] sm:$0xff]
      %v620 = vld [vmem:[#allocation2 + $0x20] sm:$0xff]
      %v621 = vld [vmem:[#allocation2 + $0x28] sm:$0xff]
      %v622 = vld [vmem:[#allocation2 + $0x30] sm:$0xff]
      %v623 = vld [vmem:[#allocation2 + $0x38] sm:$0xff]
      %v624 = vld [vmem:[#allocation2 + $0x40] sm:$0xff]
      %v625 = vld [vmem:[#allocation2 + $0x48] sm:$0xff]
      %v626 = vld [vmem:[#allocation2 + $0x50] sm:$0xff]
      %v627 = vld [vmem:[#allocation2 + $0x58] sm:$0xff]
      %v628 = vld [vmem:[#allocation2 + $0x60] sm:$0xff]
      %v629 = vld [vmem:[#allocation2 + $0x68] sm:$0xff]
      %v630 = vld [vmem:[#allocation2 + $0x70] sm:$0xff]
      %v631 = vld [vmem:[#allocation2 + $0x78] sm:$0xff]
      %632 = vmatprep.subr.mxu0 0.0
      %633 = vmatpush1.xpose.msra.mxu0 %v616
      %634 = vmatprep.subr.mxu0 0.0
      %635 = vmatpush1.xpose.msra.mxu0 %v617
      %636 = vmatprep.subr.mxu0 0.0
      %637 = vmatpush1.xpose.msra.mxu0 %v618
      %638 = vmatprep.subr.mxu0 0.0
      %639 = vmatpush1.xpose.msra.mxu0 %v619
      %640 = vmatprep.subr.mxu0 0.0
      %641 = vmatpush1.xpose.msra.mxu0 %v620
      %642 = vmatprep.subr.mxu0 0.0
      %643 = vmatpush1.xpose.msra.mxu0 %v621
      %644 = vmatprep.subr.mxu0 0.0
      %645 = vmatpush1.xpose.msra.mxu0 %v622
      %646 = vmatprep.subr.mxu0 0.0
      %647 = vmatpush1.xpose.msra.mxu0 %v623
      %648 = vmatprep.subr.mxu0 0.0
      %649 = vmatpush1.xpose.msra.mxu0 %v624
      %650 = vmatprep.subr.mxu0 0.0
      %651 = vmatpush1.xpose.msra.mxu0 %v625
      %652 = vmatprep.subr.mxu0 0.0
      %653 = vmatpush1.xpose.msra.mxu0 %v626
      %654 = vmatprep.subr.mxu0 0.0
      %655 = vmatpush1.xpose.msra.mxu0 %v627
      %656 = vmatprep.subr.mxu0 0.0
      %657 = vmatpush1.xpose.msra.mxu0 %v628
      %658 = vmatprep.subr.mxu0 0.0
      %659 = vmatpush1.xpose.msra.mxu0 %v629
      %660 = vmatprep.subr.mxu0 0.0
      %661 = vmatpush1.xpose.msra.mxu0 %v630
      %662 = vmatprep.subr.mxu0 0.0
      %663 = vmatpush1.xpose.msra.mxu0 %v631
      %664 = vmatprep.subr.mxu0 0.0
      %665 = vmatpush1.xpose.msra.mxu0 0.0
      %666 = vmatprep.subr.mxu0 0.0
      %667 = vmatpush1.xpose.msra.mxu0 0.0
      %668 = vmatprep.subr.mxu0 0.0
      %669 = vmatpush1.xpose.msra.mxu0 0.0
      %670 = vmatprep.subr.mxu0 0.0
      %671 = vmatpush1.xpose.msra.mxu0 0.0
      %672 = vmatprep.subr.mxu0 0.0
      %673 = vmatpush1.xpose.msra.mxu0 0.0
      %674 = vmatprep.subr.mxu0 0.0
      %675 = vmatpush1.xpose.msra.mxu0 0.0
      %676 = vmatprep.subr.mxu0 0.0
      %677 = vmatpush1.xpose.msra.mxu0 0.0
      %678 = vmatprep.subr.mxu0 0.0
      %679 = vmatpush1.xpose.msra.mxu0 0.0
      %680 = vmatprep.subr.mxu0 0.0
      %681 = vmatpush1.xpose.msra.mxu0 0.0
      %682 = vmatprep.subr.mxu0 0.0
      %683 = vmatpush1.xpose.msra.mxu0 0.0
      %684 = vmatprep.subr.mxu0 0.0
      %685 = vmatpush1.xpose.msra.mxu0 0.0
      %686 = vmatprep.subr.mxu0 0.0
      %687 = vmatpush1.xpose.msra.mxu0 0.0
      %688 = vmatprep.subr.mxu0 0.0
      %689 = vmatpush1.xpose.msra.mxu0 0.0
      %690 = vmatprep.subr.mxu0 0.0
      %691 = vmatpush1.xpose.msra.mxu0 0.0
      %692 = vmatprep.subr.mxu0 0.0
      %693 = vmatpush1.xpose.msra.mxu0 0.0
      %694 = vmatprep.subr.mxu0 0.0
      %695 = vmatpush1.xpose.msra.mxu0 0.0
      %696 = vmatprep.mubr.f32.mxu0 0.0
      %697 = vmatmul.mubr.f32.gmra.mrb[0].mxu0 %v600
      %v698 = vpop.f32.mrb[0].mxu0
      %v699 = vadd.f32 0.0, %v698
      %v700 = vpop.f32.mrb[0].mxu0
      %701 = vmatprep.mubr.f32.mxu0 0.0
      %702 = vmatmul.mubr.f32.gmra.mrb[0].mxu0 %v601
      %v703 = vpop.f32.mrb[0].mxu0
      %v704 = vadd.f32 0.0, %v703
      %v705 = vpop.f32.mrb[0].mxu0
      %706 = vmatprep.mubr.f32.mxu0 0.0
      %707 = vmatmul.mubr.f32.gmra.mrb[0].mxu0 %v602
      %v708 = vpop.f32.mrb[0].mxu0
      %v709 = vadd.f32 0.0, %v708
      %v710 = vpop.f32.mrb[0].mxu0
      %711 = vmatprep.mubr.f32.mxu0 0.0
      %712 = vmatmul.mubr.f32.gmra.mrb[0].mxu0 %v603
      %v713 = vpop.f32.mrb[0].mxu0
      %v714 = vadd.f32 0.0, %v713
      %v715 = vpop.f32.mrb[0].mxu0
      %716 = vmatprep.mubr.f32.mxu0 0.0
      %717 = vmatmul.mubr.f32.gmra.mrb[0].mxu0 %v604
      %v718 = vpop.f32.mrb[0].mxu0
      %v719 = vadd.f32 0.0, %v718
      %v720 = vpop.f32.mrb[0].mxu0
      %721 = vmatprep.mubr.f32.mxu0 0.0
      %722 = vmatmul.mubr.f32.gmra.mrb[0].mxu0 %v605
      %v723 = vpop.f32.mrb[0].mxu0
      %v724 = vadd.f32 0.0, %v723
      %v725 = vpop.f32.mrb[0].mxu0
      %726 = vmatprep.mubr.f32.mxu0 0.0
      %727 = vmatmul.mubr.f32.gmra.mrb[0].mxu0 %v606
      %v728 = vpop.f32.mrb[0].mxu0
      %v729 = vadd.f32 0.0, %v728
      %v730 = vpop.f32.mrb[0].mxu0
      %731 = vmatprep.mubr.f32.mxu0 0.0
      %732 = vmatmul.mubr.f32.gmra.mrb[0].mxu0 %v607
      %v733 = vpop.f32.mrb[0].mxu0
      %v734 = vadd.f32 0.0, %v733
      %v735 = vpop.f32.mrb[0].mxu0
      %736 = vmatprep.mubr.f32.mxu0 0.0
      %737 = vmatmul.mubr.f32.gmra.mrb[0].mxu0 %v608
      %v738 = vpop.f32.mrb[0].mxu0
      %v739 = vadd.f32 0.0, %v738
      %v740 = vpop.f32.mrb[0].mxu0
      %741 = vmatprep.mubr.f32.mxu0 0.0
      %742 = vmatmul.mubr.f32.gmra.mrb[0].mxu0 %v609
      %v743 = vpop.f32.mrb[0].mxu0
      %v744 = vadd.f32 0.0, %v743
      %v745 = vpop.f32.mrb[0].mxu0
      %746 = vmatprep.mubr.f32.mxu0 0.0
      %747 = vmatmul.mubr.f32.gmra.mrb[0].mxu0 %v610
      %v748 = vpop.f32.mrb[0].mxu0
      %v749 = vadd.f32 0.0, %v748
      %v750 = vpop.f32.mrb[0].mxu0
      %751 = vmatprep.mubr.f32.mxu0 0.0
      %752 = vmatmul.mubr.f32.gmra.mrb[0].mxu0 %v611
      %v753 = vpop.f32.mrb[0].mxu0
      %v754 = vadd.f32 0.0, %v753
      %v755 = vpop.f32.mrb[0].mxu0
      %756 = vmatprep.mubr.f32.mxu0 0.0
      %757 = vmatmul.mubr.f32.gmra.mrb[0].mxu0 %v612
      %v758 = vpop.f32.mrb[0].mxu0
      %v759 = vadd.f32 0.0, %v758
      %v760 = vpop.f32.mrb[0].mxu0
      %761 = vmatprep.mubr.f32.mxu0 0.0
      %762 = vmatmul.mubr.f32.gmra.mrb[0].mxu0 %v613
      %v763 = vpop.f32.mrb[0].mxu0
      %v764 = vadd.f32 0.0, %v763
      %v765 = vpop.f32.mrb[0].mxu0
      %766 = vmatprep.mubr.f32.mxu0 0.0
      %767 = vmatmul.mubr.f32.gmra.mrb[0].mxu0 %v614
      %v768 = vpop.f32.mrb[0].mxu0
      %v769 = vadd.f32 0.0, %v768
      %v770 = vpop.f32.mrb[0].mxu0
      %771 = vmatprep.mubr.f32.mxu0 0.0
      %772 = vmatmul.mubr.f32.gmra.mrb[0].mxu0 %v615
      %v773 = vpop.f32.mrb[0].mxu0
      %v774 = vadd.f32 0.0, %v773
      %v775 = vpop.f32.mrb[0].mxu0
      %776 = vdwg.mxu0
      %v777 = vld [vmem:[%s6] sm:$0xff]
      %v778 = vld [vmem:[%s6 + $0x8] sm:$0xff]
      %v779 = vld [vmem:[%s6 + $0x10] sm:$0xff]
      %v780 = vld [vmem:[%s6 + $0x18] sm:$0xff]
      %v781 = vld [vmem:[%s6 + $0x20] sm:$0xff]
      %v782 = vld [vmem:[%s6 + $0x28] sm:$0xff]
      %v783 = vld [vmem:[%s6 + $0x30] sm:$0xff]
      %v784 = vld [vmem:[%s6 + $0x38] sm:$0xff]
      %v785 = vld [vmem:[%s6 + $0x40] sm:$0xff]
      %v786 = vld [vmem:[%s6 + $0x48] sm:$0xff]
      %v787 = vld [vmem:[%s6 + $0x50] sm:$0xff]
      %v788 = vld [vmem:[%s6 + $0x58] sm:$0xff]
      %v789 = vld [vmem:[%s6 + $0x60] sm:$0xff]
      %v790 = vld [vmem:[%s6 + $0x68] sm:$0xff]
      %v791 = vld [vmem:[%s6 + $0x70] sm:$0xff]
      %v792 = vld [vmem:[%s6 + $0x78] sm:$0xff]
      %v793 = vmul.f32 %v699, 2.0
      %v794 = vmul.f32 %v704, 2.0
      %v795 = vmul.f32 %v709, 2.0
      %v796 = vmul.f32 %v714, 2.0
      %v797 = vmul.f32 %v719, 2.0
      %v798 = vmul.f32 %v724, 2.0
      %v799 = vmul.f32 %v729, 2.0
      %v800 = vmul.f32 %v734, 2.0
      %v801 = vmul.f32 %v739, 2.0
      %v802 = vmul.f32 %v744, 2.0
      %v803 = vmul.f32 %v749, 2.0
      %v804 = vmul.f32 %v754, 2.0
      %v805 = vmul.f32 %v759, 2.0
      %v806 = vmul.f32 %v764, 2.0
      %v807 = vmul.f32 %v769, 2.0
      %v808 = vmul.f32 %v774, 2.0
      %810 = vset.pattern.permute.xlu0 0
      %811 = vperm.xlu0 %810, %v777
      %v812 = vpop.permute.xlu0 %811
      %815 = vset.pattern.permute.xlu0 0
      %816 = vperm.xlu0 %815, %v778
      %v817 = vpop.permute.xlu0 %816
      %820 = vset.pattern.permute.xlu0 0
      %821 = vperm.xlu0 %820, %v779
      %v822 = vpop.permute.xlu0 %821
      %825 = vset.pattern.permute.xlu0 0
      %826 = vperm.xlu0 %825, %v780
      %v827 = vpop.permute.xlu0 %826
      %830 = vset.pattern.permute.xlu0 0
      %831 = vperm.xlu0 %830, %v781
      %v832 = vpop.permute.xlu0 %831
      %835 = vset.pattern.permute.xlu0 0
      %836 = vperm.xlu0 %835, %v782
      %v837 = vpop.permute.xlu0 %836
      %840 = vset.pattern.permute.xlu0 0
      %841 = vperm.xlu0 %840, %v783
      %v842 = vpop.permute.xlu0 %841
      %845 = vset.pattern.permute.xlu0 0
      %846 = vperm.xlu0 %845, %v784
      %v847 = vpop.permute.xlu0 %846
      %850 = vset.pattern.permute.xlu0 0
      %851 = vperm.xlu0 %850, %v785
      %v852 = vpop.permute.xlu0 %851
      %855 = vset.pattern.permute.xlu0 0
      %856 = vperm.xlu0 %855, %v786
      %v857 = vpop.permute.xlu0 %856
      %860 = vset.pattern.permute.xlu0 0
      %861 = vperm.xlu0 %860, %v787
      %v862 = vpop.permute.xlu0 %861
      %865 = vset.pattern.permute.xlu0 0
      %866 = vperm.xlu0 %865, %v788
      %v867 = vpop.permute.xlu0 %866
      %870 = vset.pattern.permute.xlu0 0
      %871 = vperm.xlu0 %870, %v789
      %v872 = vpop.permute.xlu0 %871
      %875 = vset.pattern.permute.xlu0 0
      %876 = vperm.xlu0 %875, %v790
      %v877 = vpop.permute.xlu0 %876
      %880 = vset.pattern.permute.xlu0 0
      %881 = vperm.xlu0 %880, %v791
      %v882 = vpop.permute.xlu0 %881
      %885 = vset.pattern.permute.xlu0 0
      %886 = vperm.xlu0 %885, %v792
      %v887 = vpop.permute.xlu0 %886
      %v889 = vsub.f32 %v812, %v793
      %v890 = vsub.f32 %v817, %v794
      %v891 = vsub.f32 %v822, %v795
      %v892 = vsub.f32 %v827, %v796
      %v893 = vsub.f32 %v832, %v797
      %v894 = vsub.f32 %v837, %v798
      %v895 = vsub.f32 %v842, %v799
      %v896 = vsub.f32 %v847, %v800
      %v897 = vsub.f32 %v852, %v801
      %v898 = vsub.f32 %v857, %v802
      %v899 = vsub.f32 %v862, %v803
      %v900 = vsub.f32 %v867, %v804
      %v901 = vsub.f32 %v872, %v805
      %v902 = vsub.f32 %v877, %v806
      %v903 = vsub.f32 %v882, %v807
      %v904 = vsub.f32 %v887, %v808
      %v905 = vld [vmem:[%s7] sm:$0x1]
      %v907 = vlaneseq
      %v908 = vshrl.u32 %v907, 7
      %v909 = vsub.s32 0, %v908
      %v910 = vrot.slane %v905, %v909
      %v912 = vadd.f32 %v889, %v910
      %v913 = vadd.f32 %v890, %v910
      %v914 = vadd.f32 %v891, %v910
      %v915 = vadd.f32 %v892, %v910
      %v916 = vadd.f32 %v893, %v910
      %v917 = vadd.f32 %v894, %v910
      %v918 = vadd.f32 %v895, %v910
      %v919 = vadd.f32 %v896, %v910
      %v920 = vadd.f32 %v897, %v910
      %v921 = vadd.f32 %v898, %v910
      %v922 = vadd.f32 %v899, %v910
      %v923 = vadd.f32 %v900, %v910
      %v924 = vadd.f32 %v901, %v910
      %v925 = vadd.f32 %v902, %v910
      %v926 = vadd.f32 %v903, %v910
      %v927 = vadd.f32 %v904, %v910
      %s928 = sld [smem:[#allocation7]]
      %v929 = vstv %s928
      %v930 = vmul.f32 %v912, %v929
      %v931 = vmul.f32 %v913, %v929
      %v932 = vmul.f32 %v914, %v929
      %v933 = vmul.f32 %v915, %v929
      %v934 = vmul.f32 %v916, %v929
      %v935 = vmul.f32 %v917, %v929
      %v936 = vmul.f32 %v918, %v929
      %v937 = vmul.f32 %v919, %v929
      %v938 = vmul.f32 %v920, %v929
      %v939 = vmul.f32 %v921, %v929
      %v940 = vmul.f32 %v922, %v929
      %v941 = vmul.f32 %v923, %v929
      %v942 = vmul.f32 %v924, %v929
      %v943 = vmul.f32 %v925, %v929
      %v944 = vmul.f32 %v926, %v929
      %v945 = vmul.f32 %v927, %v929
      %v946 = vmul.f32 %v930, 1.442695
      %v947 = vpow.pop %v946
      %v948 = vmul.f32 %v931, 1.442695
      %v949 = vpow.pop %v948
      %v950 = vmul.f32 %v932, 1.442695
      %v951 = vpow.pop %v950
      %v952 = vmul.f32 %v933, 1.442695
      %v953 = vpow.pop %v952
      %v954 = vmul.f32 %v934, 1.442695
      %v955 = vpow.pop %v954
      %v956 = vmul.f32 %v935, 1.442695
      %v957 = vpow.pop %v956
      %v958 = vmul.f32 %v936, 1.442695
      %v959 = vpow.pop %v958
      %v960 = vmul.f32 %v937, 1.442695
      %v961 = vpow.pop %v960
      %v962 = vmul.f32 %v938, 1.442695
      %v963 = vpow.pop %v962
      %v964 = vmul.f32 %v939, 1.442695
      %v965 = vpow.pop %v964
      %v966 = vmul.f32 %v940, 1.442695
      %v967 = vpow.pop %v966
      %v968 = vmul.f32 %v941, 1.442695
      %v969 = vpow.pop %v968
      %v970 = vmul.f32 %v942, 1.442695
      %v971 = vpow.pop %v970
      %v972 = vmul.f32 %v943, 1.442695
      %v973 = vpow.pop %v972
      %v974 = vmul.f32 %v944, 1.442695
      %v975 = vpow.pop %v974
      %v976 = vmul.f32 %v945, 1.442695
      %v977 = vpow.pop %v976
      %s978 = sld [smem:[#allocation7 + $0x1]]
      %v979 = vstv %s978
      %v980 = vmul.f32 %v912, %v979
      %v981 = vmul.f32 %v913, %v979
      %v982 = vmul.f32 %v914, %v979
      %v983 = vmul.f32 %v915, %v979
      %v984 = vmul.f32 %v916, %v979
      %v985 = vmul.f32 %v917, %v979
      %v986 = vmul.f32 %v918, %v979
      %v987 = vmul.f32 %v919, %v979
      %v988 = vmul.f32 %v920, %v979
      %v989 = vmul.f32 %v921, %v979
      %v990 = vmul.f32 %v922, %v979
      %v991 = vmul.f32 %v923, %v979
      %v992 = vmul.f32 %v924, %v979
      %v993 = vmul.f32 %v925, %v979
      %v994 = vmul.f32 %v926, %v979
      %v995 = vmul.f32 %v927, %v979
      %v996 = vmul.f32 %v980, 1.442695
      %v997 = vpow.pop %v996
      %v998 = vmul.f32 %v981, 1.442695
      %v999 = vpow.pop %v998
      %v1000 = vmul.f32 %v982, 1.442695
      %v1001 = vpow.pop %v1000
      %v1002 = vmul.f32 %v983, 1.442695
      %v1003 = vpow.pop %v1002
      %v1004 = vmul.f32 %v984, 1.442695
      %v1005 = vpow.pop %v1004
      %v1006 = vmul.f32 %v985, 1.442695
      %v1007 = vpow.pop %v1006
      %v1008 = vmul.f32 %v986, 1.442695
      %v1009 = vpow.pop %v1008
      %v1010 = vmul.f32 %v987, 1.442695
      %v1011 = vpow.pop %v1010
      %v1012 = vmul.f32 %v988, 1.442695
      %v1013 = vpow.pop %v1012
      %v1014 = vmul.f32 %v989, 1.442695
      %v1015 = vpow.pop %v1014
      %v1016 = vmul.f32 %v990, 1.442695
      %v1017 = vpow.pop %v1016
      %v1018 = vmul.f32 %v991, 1.442695
      %v1019 = vpow.pop %v1018
      %v1020 = vmul.f32 %v992, 1.442695
      %v1021 = vpow.pop %v1020
      %v1022 = vmul.f32 %v993, 1.442695
      %v1023 = vpow.pop %v1022
      %v1024 = vmul.f32 %v994, 1.442695
      %v1025 = vpow.pop %v1024
      %v1026 = vmul.f32 %v995, 1.442695
      %v1027 = vpow.pop %v1026
      %v1028 = vadd.f32 %v947, %v997
      %v1029 = vadd.f32 %v949, %v999
      %v1030 = vadd.f32 %v951, %v1001
      %v1031 = vadd.f32 %v953, %v1003
      %v1032 = vadd.f32 %v955, %v1005
      %v1033 = vadd.f32 %v957, %v1007
      %v1034 = vadd.f32 %v959, %v1009
      %v1035 = vadd.f32 %v961, %v1011
      %v1036 = vadd.f32 %v963, %v1013
      %v1037 = vadd.f32 %v965, %v1015
      %v1038 = vadd.f32 %v967, %v1017
      %v1039 = vadd.f32 %v969, %v1019
      %v1040 = vadd.f32 %v971, %v1021
      %v1041 = vadd.f32 %v973, %v1023
      %v1042 = vadd.f32 %v975, %v1025
      %v1043 = vadd.f32 %v977, %v1027
      %v1044 = vmul.f32 %v584, %v1028
      %v1045 = vmul.f32 %v585, %v1029
      %v1046 = vmul.f32 %v586, %v1030
      %v1047 = vmul.f32 %v587, %v1031
      %v1048 = vmul.f32 %v588, %v1032
      %v1049 = vmul.f32 %v589, %v1033
      %v1050 = vmul.f32 %v590, %v1034
      %v1051 = vmul.f32 %v591, %v1035
      %v1052 = vmul.f32 %v592, %v1036
      %v1053 = vmul.f32 %v593, %v1037
      %v1054 = vmul.f32 %v594, %v1038
      %v1055 = vmul.f32 %v595, %v1039
      %v1056 = vmul.f32 %v596, %v1040
      %v1057 = vmul.f32 %v597, %v1041
      %v1058 = vmul.f32 %v598, %v1042
      %v1059 = vmul.f32 %v599, %v1043
      %v1060 = vld [vmem:[%s8] sm:$0xff]
      %v1061 = vld [vmem:[%s8 + $0x8] sm:$0xff]
      %v1062 = vld [vmem:[%s8 + $0x10] sm:$0xff]
      %v1063 = vld [vmem:[%s8 + $0x18] sm:$0xff]
      %v1064 = vld [vmem:[%s8 + $0x20] sm:$0xff]
      %v1065 = vld [vmem:[%s8 + $0x28] sm:$0xff]
      %v1066 = vld [vmem:[%s8 + $0x30] sm:$0xff]
      %v1067 = vld [vmem:[%s8 + $0x38] sm:$0xff]
      %v1068 = vld [vmem:[%s8 + $0x40] sm:$0xff]
      %v1069 = vld [vmem:[%s8 + $0x48] sm:$0xff]
      %v1070 = vld [vmem:[%s8 + $0x50] sm:$0xff]
      %v1071 = vld [vmem:[%s8 + $0x58] sm:$0xff]
      %v1072 = vld [vmem:[%s8 + $0x60] sm:$0xff]
      %v1073 = vld [vmem:[%s8 + $0x68] sm:$0xff]
      %v1074 = vld [vmem:[%s8 + $0x70] sm:$0xff]
      %v1075 = vld [vmem:[%s8 + $0x78] sm:$0xff]
      %v1076 = vld [vmem:[%s9] sm:$0x1]
      %1078 = vset.pattern.permute.xlu0 0
      %1079 = vperm.xlu0 %1078, %v1060
      %v1080 = vpop.permute.xlu0 %1079
      %1083 = vset.pattern.permute.xlu0 0
      %1084 = vperm.xlu0 %1083, %v1061
      %v1085 = vpop.permute.xlu0 %1084
      %1088 = vset.pattern.permute.xlu0 0
      %1089 = vperm.xlu0 %1088, %v1062
      %v1090 = vpop.permute.xlu0 %1089
      %1093 = vset.pattern.permute.xlu0 0
      %1094 = vperm.xlu0 %1093, %v1063
      %v1095 = vpop.permute.xlu0 %1094
      %1098 = vset.pattern.permute.xlu0 0
      %1099 = vperm.xlu0 %1098, %v1064
      %v1100 = vpop.permute.xlu0 %1099
      %1103 = vset.pattern.permute.xlu0 0
      %1104 = vperm.xlu0 %1103, %v1065
      %v1105 = vpop.permute.xlu0 %1104
      %1108 = vset.pattern.permute.xlu0 0
      %1109 = vperm.xlu0 %1108, %v1066
      %v1110 = vpop.permute.xlu0 %1109
      %1113 = vset.pattern.permute.xlu0 0
      %1114 = vperm.xlu0 %1113, %v1067
      %v1115 = vpop.permute.xlu0 %1114
      %1118 = vset.pattern.permute.xlu0 0
      %1119 = vperm.xlu0 %1118, %v1068
      %v1120 = vpop.permute.xlu0 %1119
      %1123 = vset.pattern.permute.xlu0 0
      %1124 = vperm.xlu0 %1123, %v1069
      %v1125 = vpop.permute.xlu0 %1124
      %1128 = vset.pattern.permute.xlu0 0
      %1129 = vperm.xlu0 %1128, %v1070
      %v1130 = vpop.permute.xlu0 %1129
      %1133 = vset.pattern.permute.xlu0 0
      %1134 = vperm.xlu0 %1133, %v1071
      %v1135 = vpop.permute.xlu0 %1134
      %1138 = vset.pattern.permute.xlu0 0
      %1139 = vperm.xlu0 %1138, %v1072
      %v1140 = vpop.permute.xlu0 %1139
      %1143 = vset.pattern.permute.xlu0 0
      %1144 = vperm.xlu0 %1143, %v1073
      %v1145 = vpop.permute.xlu0 %1144
      %1148 = vset.pattern.permute.xlu0 0
      %1149 = vperm.xlu0 %1148, %v1074
      %v1150 = vpop.permute.xlu0 %1149
      %1153 = vset.pattern.permute.xlu0 0
      %1154 = vperm.xlu0 %1153, %v1075
      %v1155 = vpop.permute.xlu0 %1154
      %v1158 = vlaneseq
      %v1159 = vshrl.u32 %v1158, 7
      %v1160 = vsub.s32 0, %v1159
      %v1161 = vrot.slane %v1076, %v1160
      %v1163 = vmul.f32 %v1080, %v1161
      %v1164 = vmul.f32 %v1085, %v1161
      %v1165 = vmul.f32 %v1090, %v1161
      %v1166 = vmul.f32 %v1095, %v1161
      %v1167 = vmul.f32 %v1100, %v1161
      %v1168 = vmul.f32 %v1105, %v1161
      %v1169 = vmul.f32 %v1110, %v1161
      %v1170 = vmul.f32 %v1115, %v1161
      %v1171 = vmul.f32 %v1120, %v1161
      %v1172 = vmul.f32 %v1125, %v1161
      %v1173 = vmul.f32 %v1130, %v1161
      %v1174 = vmul.f32 %v1135, %v1161
      %v1175 = vmul.f32 %v1140, %v1161
      %v1176 = vmul.f32 %v1145, %v1161
      %v1177 = vmul.f32 %v1150, %v1161
      %v1178 = vmul.f32 %v1155, %v1161
      %v1179 = vmul.f32 %v1044, %v1163
      %v1180 = vmul.f32 %v1045, %v1164
      %v1181 = vmul.f32 %v1046, %v1165
      %v1182 = vmul.f32 %v1047, %v1166
      %v1183 = vmul.f32 %v1048, %v1167
      %v1184 = vmul.f32 %v1049, %v1168
      %v1185 = vmul.f32 %v1050, %v1169
      %v1186 = vmul.f32 %v1051, %v1170
      %v1187 = vmul.f32 %v1052, %v1171
      %v1188 = vmul.f32 %v1053, %v1172
      %v1189 = vmul.f32 %v1054, %v1173
      %v1190 = vmul.f32 %v1055, %v1174
      %v1191 = vmul.f32 %v1056, %v1175
      %v1192 = vmul.f32 %v1057, %v1176
      %v1193 = vmul.f32 %v1058, %v1177
      %v1194 = vmul.f32 %v1059, %v1178
      %p1195 = scmp.gt.s32.totalorder 0, 0
      %s1196 = scalar_select %p1195, 1, 0
      %s1197 = scvt.s32.f32 %s1196
      %s1198 = sadd.f32 %s1197, 1.0
      %v1199 = vld [vmem:[#allocation9] sm:$0x1]
      %v1200 = vadd.f32 %v1179, %v1180
      %v1201 = vadd.f32 %v1200, %v1181
      %v1202 = vadd.f32 %v1201, %v1182
      %v1203 = vadd.f32 %v1202, %v1183
      %v1204 = vadd.f32 %v1203, %v1184
      %v1205 = vadd.f32 %v1204, %v1185
      %v1206 = vadd.f32 %v1205, %v1186
      %v1207 = vadd.f32 %v1206, %v1187
      %v1208 = vadd.f32 %v1207, %v1188
      %v1209 = vadd.f32 %v1208, %v1189
      %v1210 = vadd.f32 %v1209, %v1190
      %v1211 = vadd.f32 %v1210, %v1191
      %v1212 = vadd.f32 %v1211, %v1192
      %v1213 = vadd.f32 %v1212, %v1193
      %v1214 = vadd.f32 %v1213, %v1194
      %1215 = vadd.xlane.f32.xlu0 %v1214
      %v1216 = vpop.xlane.xlu0 %1215
      %v1217 = vrot.slane %v1216, 4
      %v1218 = vadd.f32 %v1216, %v1217
      %v1219 = vrot.slane %v1218, 2
      %v1220 = vadd.f32 %v1218, %v1219
      %v1221 = vrot.slane %v1220, 1
      %v1222 = vadd.f32 %v1220, %v1221
      %s1223 = vtos %v1222
      %s1224 = smul.f32 %s1198, %s1223
      %v1225 = vstv %s1224
      %v1226 = vadd.f32 %v1199, %v1225
      %1227 = vst [vmem:[#allocation9] sm:$0x1] %v1226
    $region69: #{tpu_custom_call.1} parent=1 // pred_fallthru
      _
    // Predicated region
    $region70: #{tpu_custom_call.1} parent=1 // pred_check
      _
    $region71: #{tpu_custom_call.1} parent=1 // pred_check_branch
      %1229 = sbr.rel (0) target = $region73
    $region72: #{tpu_custom_call.1} parent=1 // pred_region
      %s1231 = ssub.s32 16, 16
      %1232 = vsyncadd [#allocation4], %s1231
      %s1234 = sshll.u32 [#allocation9], 4
      %s1235 = int_to_ptr.vmem [resolvable:$true] %s1234
      %1237 = dma.vmem_to_hbm [thread:$0]  %s1235, 16, %s12, [#allocation4]
    $region73: #{tpu_custom_call.1} parent=1 // pred_fallthru
      _
    // Predicated region
    $region74: #{tpu_custom_call.1} parent=1 // pred_check
      _
    $region75: #{tpu_custom_call.1} parent=1 // pred_check_branch
      %1239 = sbr.rel (0) target = $region77
    $region76: #{tpu_custom_call.1} parent=1 // pred_region
      %1240 = dma.done [#allocation4], 16
    $region77: #{tpu_custom_call.1} parent=1 // pred_fallthru
      _
    %1241 = vsyncpa [#allocation3], 1
    %1242 = vsyncpa [#allocation4], 1
    %1243 = vsyncpa [#allocation5], 1
    %1244 = vsyncpa [#allocation8], 1

</llo_original>
